<compile_context>
chip_gen: v6e
topology: v6e:2x2x1
jax: 0.10.0
libtpu: 0.0.40
codegen_flags: <defaults>
</compile_context>

<pallas_src>
import functools

import jax
import jax.numpy as jnp
from jax.experimental import pallas as pl
from jax.experimental.pallas import tpu as pltpu

LANE = 128          # lane width: hidden/output feature dims padded to this
MAX_TILE_B = 1024   # upper bound on the batch tile (M fed to the MXU)
MIN_SPLIT_B = 512   # batches >= this always get >= 2 grid steps (v7x 2 TCs)


def _round_up(n, m):
    return ((n + m - 1) // m) * m


def _choose_tile_b(batch):
    """Pick the batch tile.

    - multiple of 16 (bf16 sublane packing for the bf16 output tile),
    - as large as possible (amortize ~0.35us/grid-step + MXU fill/drain),
    - >= 2 roughly even grid steps once the batch is big enough, so v7x's two
      TensorCores both get work under dimension_semantics=("parallel",),
    - even tiles so the last tile isn't mostly padding.
    """
    b16 = _round_up(max(batch, 16), 16)
    if b16 < MIN_SPLIT_B:
        return b16                                   # single small tile
    num_tiles = max(pl.cdiv(b16, MAX_TILE_B), 2)
    return _round_up(pl.cdiv(batch, num_tiles), 16)


def mlp_kernel(x_ref, w1_ref, b1_ref, w2_ref, b2_ref, w3_ref, b3_ref,
               wp_ref, bp_ref, o_ref):
    # x_ref: (tile_b, n_feature) f32 -> cast to bf16 in-kernel (no extra HBM
    # pass in the wrapper).  w*_ref: bf16 (feature dims padded to 128).
    # b*_ref: f32 (1, N_pad).  o_ref: bf16 (tile_b, O_pad), lane-dense.
    x = x_ref[...].astype(jnp.bfloat16)

    # hidden1 + relu   (dropout1 = identity in eval mode)
    h = jnp.dot(x, w1_ref[...], preferred_element_type=jnp.float32)
    h = jnp.maximum(h + b1_ref[...], 0.0)

    # hidden2 + relu   (dropout2 = identity in eval mode)
    h = jnp.dot(h.astype(jnp.bfloat16), w2_ref[...],
                preferred_element_type=jnp.float32)
    h = jnp.maximum(h + b2_ref[...], 0.0)

    # hidden3 + relu   (dropout3 = identity in eval mode)
    h = jnp.dot(h.astype(jnp.bfloat16), w3_ref[...],
                preferred_element_type=jnp.float32)
    h = jnp.maximum(h + b3_ref[...], 0.0)

    # predict (no activation); bf16 store halves the largest HBM stream.
    y = jnp.dot(h.astype(jnp.bfloat16), wp_ref[...],
                preferred_element_type=jnp.float32)
    o_ref[...] = (y + bp_ref[...]).astype(o_ref.dtype)


def init_params(key, n_feature, n_hidden, n_output):
    """Deterministic init mimicking nn.Linear (uniform +/- 1/sqrt(fan_in)).

    Weights stored transposed as (in_features, out_features); biases (1, out).
    """
    keys = jax.random.split(key, 8)

    def linear(kw, kb, fan_in, fan_out):
        bound = 1.0 / jnp.sqrt(float(fan_in))
        w = jax.random.uniform(kw, (fan_in, fan_out), jnp.float32, -bound, bound)
        b = jax.random.uniform(kb, (1, fan_out), jnp.float32, -bound, bound)
        return w, b

    w1, b1 = linear(keys[0], keys[1], n_feature, n_hidden)
    w2, b2 = linear(keys[2], keys[3], n_hidden, n_hidden)
    w3, b3 = linear(keys[4], keys[5], n_hidden, n_hidden)
    wp, bp = linear(keys[6], keys[7], n_hidden, n_output)
    return {"w1": w1, "b1": b1, "w2": w2, "b2": b2,
            "w3": w3, "b3": b3, "wp": wp, "bp": bp}


def pack_params(params):
    """One-time zero-padding of hidden/output dims to 128 + bf16 weight cast.

    Padding is strictly zero so padded hidden/output columns stay exactly zero
    through the ReLU(x@W+b) chain.  The first layer keeps its input dim
    (n_feature) unpadded: the in-kernel matmul handles a small K directly.
    """
    def pad_w(w, pad_in):
        fi, fo = w.shape
        fi_p = _round_up(fi, LANE) if pad_in else fi
        fo_p = _round_up(fo, LANE)
        out = jnp.zeros((fi_p, fo_p), jnp.float32).at[:fi, :fo].set(w)
        return out.astype(jnp.bfloat16)

    def pad_b(b):
        fo = b.shape[1]
        out = jnp.zeros((1, _round_up(fo, LANE)), jnp.float32)
        return out.at[:, :fo].set(b)          # biases stay f32

    return {
        "w1": pad_w(params["w1"], pad_in=False), "b1": pad_b(params["b1"]),
        "w2": pad_w(params["w2"], pad_in=True),  "b2": pad_b(params["b2"]),
        "w3": pad_w(params["w3"], pad_in=True),  "b3": pad_b(params["b3"]),
        "wp": pad_w(params["wp"], pad_in=True),  "bp": pad_b(params["bp"]),
    }


@functools.partial(jax.jit, static_argnames=("n_output",))
def net_forward(x, packed, *, n_output):
    """x: (B, n_feature) f32.  packed: output of pack_params."""
    w1, b1 = packed["w1"], packed["b1"]
    w2, b2 = packed["w2"], packed["b2"]
    w3, b3 = packed["w3"], packed["b3"]
    wp, bp = packed["wp"], packed["bp"]

    B, F = x.shape
    H_pad = w2.shape[0]
    O_pad = wp.shape[1]

    tile_b = _choose_tile_b(B)
    num_tiles = pl.cdiv(B, tile_b)

    flops = 2 * num_tiles * tile_b * (
        F * H_pad + 2 * H_pad * H_pad + H_pad * O_pad)
    bytes_accessed = (
        x.size * x.dtype.itemsize
        + sum(a.size * a.dtype.itemsize
              for a in (w1, w2, w3, wp, b1, b2, b3, bp))
        + B * O_pad * 2)                       # bf16 output writeback

    # Weights/biases: constant block index -> resident in VMEM across steps.
    resident = lambda a: pl.BlockSpec(a.shape, lambda i: (0,) * a.ndim)

    out_p = pl.pallas_call(
        mlp_kernel,
        out_shape=jax.ShapeDtypeStruct((B, O_pad), jnp.bfloat16),
        grid=(num_tiles,),
        in_specs=[
            pl.BlockSpec((tile_b, F), lambda i: (i, 0)),   # x: batch-tiled f32
            resident(w1), resident(b1),
            resident(w2), resident(b2),
            resident(w3), resident(b3),
            resident(wp), resident(bp),
        ],
        out_specs=pl.BlockSpec((tile_b, O_pad), lambda i: (i, 0)),
        compiler_params=pltpu.CompilerParams(
            dimension_semantics=("parallel",),   # v7x: batch split across 2 TCs
            vmem_limit_bytes=32 * 1024 * 1024,   # ample even at tile_b=1024
        ),
        cost_estimate=pl.CostEstimate(
            flops=flops, transcendentals=0, bytes_accessed=bytes_accessed),
    )(x, w1, b1, w2, b2, w3, b3, wp, bp)

    # Lane padding sliced off outside (bf16 -> half the bytes of the old f32
    # pass); consumers that accept the padded (B, O_pad) slab can skip this.
    return out_p[:, :n_output]


if __name__ == "__main__":
    n_feature, n_hidden, n_output = 16, 32, 4
    batch = 8

    key = jax.random.PRNGKey(0)
    k_params, k_x = jax.random.split(key)
    params = init_params(k_params, n_feature, n_hidden, n_output)
    packed = pack_params(params)
    x = jax.random.normal(k_x, (batch, n_feature), jnp.float32)

    out = net_forward(x, packed, n_output=n_output)
    jax.block_until_ready(out)

    # Pure-JAX f32 reference of the original module (eval mode).
    relu = lambda v: jnp.maximum(v, 0.0)
    h = relu(x @ params["w1"] + params["b1"])
    h = relu(h @ params["w2"] + params["b2"])
    h = relu(h @ params["w3"] + params["b3"])
    ref = h @ params["wp"] + params["bp"]

    assert out.shape == (batch, n_output)
    out_f32 = out.astype(jnp.float32)
    # bf16 MXU operands + bf16 output store vs f32 reference -> relaxed tol.
    assert jnp.allclose(out_f32, ref, atol=2e-2, rtol=2e-2), (
        f"max abs err {float(jnp.max(jnp.abs(out_f32 - ref)))}")

    print("KERNEL_OK")
</pallas_src>

<mosaic_0001>
module attributes {stable_mosaic.version = 11 : i64} {
  func.func @mlp_kernel(%arg0: i32, %arg1: memref<16x16xf32, #tpu.memory_space<vmem>>, %arg2: memref<16x128xbf16, #tpu.memory_space<vmem>>, %arg3: memref<1x128xf32, #tpu.memory_space<vmem>>, %arg4: memref<128x128xbf16, #tpu.memory_space<vmem>>, %arg5: memref<1x128xf32, #tpu.memory_space<vmem>>, %arg6: memref<128x128xbf16, #tpu.memory_space<vmem>>, %arg7: memref<1x128xf32, #tpu.memory_space<vmem>>, %arg8: memref<128x128xbf16, #tpu.memory_space<vmem>>, %arg9: memref<1x128xf32, #tpu.memory_space<vmem>>, %arg10: memref<16x128xbf16, #tpu.memory_space<vmem>>) attributes {dimension_semantics = [#tpu.dimension_semantics<parallel>], iteration_bounds = array<i64: 1>, scalar_prefetch = 0 : i64, scratch_operands = 0 : i64, tpu.core_type = #tpu.core_type<tc>, window_params = [{transform_indices = @transform_0, window_bounds = array<i64: 16, 16>}, {pipeline_mode = #tpu.pipeline_mode<synchronous>, transform_indices = @transform_1, window_bounds = array<i64: 16, 128>}, {pipeline_mode = #tpu.pipeline_mode<synchronous>, transform_indices = @transform_2, window_bounds = array<i64: 1, 128>}, {pipeline_mode = #tpu.pipeline_mode<synchronous>, transform_indices = @transform_3, window_bounds = array<i64: 128, 128>}, {pipeline_mode = #tpu.pipeline_mode<synchronous>, transform_indices = @transform_4, window_bounds = array<i64: 1, 128>}, {pipeline_mode = #tpu.pipeline_mode<synchronous>, transform_indices = @transform_5, window_bounds = array<i64: 128, 128>}, {pipeline_mode = #tpu.pipeline_mode<synchronous>, transform_indices = @transform_6, window_bounds = array<i64: 1, 128>}, {pipeline_mode = #tpu.pipeline_mode<synchronous>, transform_indices = @transform_7, window_bounds = array<i64: 128, 128>}, {pipeline_mode = #tpu.pipeline_mode<synchronous>, transform_indices = @transform_8, window_bounds = array<i64: 1, 128>}, {transform_indices = @transform_9, window_bounds = array<i64: 16, 128>}]} {
    %c0 = arith.constant 0 : index
    %c0_0 = arith.constant 0 : index
    %0 = vector.load %arg1[%c0, %c0_0] : memref<16x16xf32, #tpu.memory_space<vmem>>, vector<16x16xf32>
    %1 = arith.truncf %0 : vector<16x16xf32> to vector<16x16xbf16>
    %c0_1 = arith.constant 0 : index
    %c0_2 = arith.constant 0 : index
    %2 = vector.load %arg2[%c0_1, %c0_2] : memref<16x128xbf16, #tpu.memory_space<vmem>>, vector<16x128xbf16>
    %cst = arith.constant dense<0.000000e+00> : vector<16x128xf32>
    %3 = tpu.matmul %1, %2, %cst {dimension_numbers = #tpu.dot_dimension_numbers<[1], [0], [0], [1], [0, 0, 1, 1], [], []>} : vector<16x16xbf16>, vector<16x128xbf16>, vector<16x128xf32> -> vector<16x128xf32>
    %c0_3 = arith.constant 0 : index
    %c0_4 = arith.constant 0 : index
    %4 = vector.load %arg3[%c0_3, %c0_4] : memref<1x128xf32, #tpu.memory_space<vmem>>, vector<1x128xf32>
    %5 = vector.broadcast %4 : vector<1x128xf32> to vector<16x128xf32>
    %6 = arith.addf %3, %5 : vector<16x128xf32>
    %cst_5 = arith.constant 0.000000e+00 : f32
    %7 = vector.broadcast %cst_5 : f32 to vector<16x128xf32>
    %8 = arith.maximumf %6, %7 : vector<16x128xf32>
    %9 = arith.truncf %8 : vector<16x128xf32> to vector<16x128xbf16>
    %c0_6 = arith.constant 0 : index
    %c0_7 = arith.constant 0 : index
    %10 = vector.load %arg4[%c0_6, %c0_7] : memref<128x128xbf16, #tpu.memory_space<vmem>>, vector<128x128xbf16>
    %cst_8 = arith.constant dense<0.000000e+00> : vector<16x128xf32>
    %11 = tpu.matmul %9, %10, %cst_8 {dimension_numbers = #tpu.dot_dimension_numbers<[1], [0], [0], [1], [0, 0, 1, 1], [], []>} : vector<16x128xbf16>, vector<128x128xbf16>, vector<16x128xf32> -> vector<16x128xf32>
    %c0_9 = arith.constant 0 : index
    %c0_10 = arith.constant 0 : index
    %12 = vector.load %arg5[%c0_9, %c0_10] : memref<1x128xf32, #tpu.memory_space<vmem>>, vector<1x128xf32>
    %13 = vector.broadcast %12 : vector<1x128xf32> to vector<16x128xf32>
    %14 = arith.addf %11, %13 : vector<16x128xf32>
    %cst_11 = arith.constant 0.000000e+00 : f32
    %15 = vector.broadcast %cst_11 : f32 to vector<16x128xf32>
    %16 = arith.maximumf %14, %15 : vector<16x128xf32>
    %17 = arith.truncf %16 : vector<16x128xf32> to vector<16x128xbf16>
    %c0_12 = arith.constant 0 : index
    %c0_13 = arith.constant 0 : index
    %18 = vector.load %arg6[%c0_12, %c0_13] : memref<128x128xbf16, #tpu.memory_space<vmem>>, vector<128x128xbf16>
    %cst_14 = arith.constant dense<0.000000e+00> : vector<16x128xf32>
    %19 = tpu.matmul %17, %18, %cst_14 {dimension_numbers = #tpu.dot_dimension_numbers<[1], [0], [0], [1], [0, 0, 1, 1], [], []>} : vector<16x128xbf16>, vector<128x128xbf16>, vector<16x128xf32> -> vector<16x128xf32>
    %c0_15 = arith.constant 0 : index
    %c0_16 = arith.constant 0 : index
    %20 = vector.load %arg7[%c0_15, %c0_16] : memref<1x128xf32, #tpu.memory_space<vmem>>, vector<1x128xf32>
    %21 = vector.broadcast %20 : vector<1x128xf32> to vector<16x128xf32>
    %22 = arith.addf %19, %21 : vector<16x128xf32>
    %cst_17 = arith.constant 0.000000e+00 : f32
    %23 = vector.broadcast %cst_17 : f32 to vector<16x128xf32>
    %24 = arith.maximumf %22, %23 : vector<16x128xf32>
    %25 = arith.truncf %24 : vector<16x128xf32> to vector<16x128xbf16>
    %c0_18 = arith.constant 0 : index
    %c0_19 = arith.constant 0 : index
    %26 = vector.load %arg8[%c0_18, %c0_19] : memref<128x128xbf16, #tpu.memory_space<vmem>>, vector<128x128xbf16>
    %cst_20 = arith.constant dense<0.000000e+00> : vector<16x128xf32>
    %27 = tpu.matmul %25, %26, %cst_20 {dimension_numbers = #tpu.dot_dimension_numbers<[1], [0], [0], [1], [0, 0, 1, 1], [], []>} : vector<16x128xbf16>, vector<128x128xbf16>, vector<16x128xf32> -> vector<16x128xf32>
    %c0_21 = arith.constant 0 : index
    %c0_22 = arith.constant 0 : index
    %28 = vector.load %arg9[%c0_21, %c0_22] : memref<1x128xf32, #tpu.memory_space<vmem>>, vector<1x128xf32>
    %29 = vector.broadcast %28 : vector<1x128xf32> to vector<16x128xf32>
    %30 = arith.addf %27, %29 : vector<16x128xf32>
    %31 = arith.truncf %30 : vector<16x128xf32> to vector<16x128xbf16>
    %c0_23 = arith.constant 0 : index
    %c0_24 = arith.constant 0 : index
    %32 = vector.load %arg10[%c0_23, %c0_24] : memref<16x128xbf16, #tpu.memory_space<vmem>>, vector<16x128xbf16>
    tpu.vector_store %arg10[%c0_23, %c0_24], %31 {strides = array<i32>} : memref<16x128xbf16, #tpu.memory_space<vmem>>, vector<16x128xbf16>,
    return
  }
  func.func @transform_0(%arg0: i32) -> (i32, i32) {
    %c0_i32 = arith.constant 0 : i32
    %c0_i32_0 = arith.constant 0 : i32
    return %arg0, %c0_i32 : i32, i32
  }
  func.func @transform_1(%arg0: i32) -> (i32, i32) {
    %c0_i32 = arith.constant 0 : i32
    %c0_i32_0 = arith.constant 0 : i32
    %c0_i32_1 = arith.constant 0 : i32
    return %c0_i32, %c0_i32_0 : i32, i32
  }
  func.func @transform_2(%arg0: i32) -> (i32, i32) {
    %c0_i32 = arith.constant 0 : i32
    %c0_i32_0 = arith.constant 0 : i32
    %c0_i32_1 = arith.constant 0 : i32
    return %c0_i32, %c0_i32_0 : i32, i32
  }
  func.func @transform_3(%arg0: i32) -> (i32, i32) {
    %c0_i32 = arith.constant 0 : i32
    %c0_i32_0 = arith.constant 0 : i32
    %c0_i32_1 = arith.constant 0 : i32
    return %c0_i32, %c0_i32_0 : i32, i32
  }
  func.func @transform_4(%arg0: i32) -> (i32, i32) {
    %c0_i32 = arith.constant 0 : i32
    %c0_i32_0 = arith.constant 0 : i32
    %c0_i32_1 = arith.constant 0 : i32
    return %c0_i32, %c0_i32_0 : i32, i32
  }
  func.func @transform_5(%arg0: i32) -> (i32, i32) {
    %c0_i32 = arith.constant 0 : i32
    %c0_i32_0 = arith.constant 0 : i32
    %c0_i32_1 = arith.constant 0 : i32
    return %c0_i32, %c0_i32_0 : i32, i32
  }
  func.func @transform_6(%arg0: i32) -> (i32, i32) {
    %c0_i32 = arith.constant 0 : i32
    %c0_i32_0 = arith.constant 0 : i32
    %c0_i32_1 = arith.constant 0 : i32
    return %c0_i32, %c0_i32_0 : i32, i32
  }
  func.func @transform_7(%arg0: i32) -> (i32, i32) {
    %c0_i32 = arith.constant 0 : i32
    %c0_i32_0 = arith.constant 0 : i32
    %c0_i32_1 = arith.constant 0 : i32
    return %c0_i32, %c0_i32_0 : i32, i32
  }
  func.func @transform_8(%arg0: i32) -> (i32, i32) {
    %c0_i32 = arith.constant 0 : i32
    %c0_i32_0 = arith.constant 0 : i32
    %c0_i32_1 = arith.constant 0 : i32
    return %c0_i32, %c0_i32_0 : i32, i32
  }
  func.func @transform_9(%arg0: i32) -> (i32, i32) {
    %c0_i32 = arith.constant 0 : i32
    %c0_i32_0 = arith.constant 0 : i32
    return %arg0, %c0_i32 : i32, i32
  }
}

</mosaic_0001>

<llo_original>
// kernel: net_forward.1
$region0: #{net_forward.1}
  #allocation0 [shape = 'u32[]', space=smem, size = 0x4, offset = 0x4, fixed_abs, tag = 'smem constant byte address 0x4 - core index']
  #allocation1 [shape = 'u32[144,128]{1,0:T(1,128)}', space=vmem, size = 0x12000, scoped, tag = 'internal scratch']
  %s0 = inlined_call_operand.hbm [shape: f32[8,16], index: 0, kind: input, shape index: {}]
  %s1 = inlined_call_operand.vmem [shape: bf16[16,128], index: 1, kind: input, shape index: {}]
  %s2 = inlined_call_operand.vmem [shape: f32[1,128], index: 2, kind: input, shape index: {}]
  %s3 = inlined_call_operand.hbm [shape: bf16[128,128], index: 3, kind: input, shape index: {}]
  %s4 = inlined_call_operand.hbm [shape: f32[1,128], index: 4, kind: input, shape index: {}]
  %s5 = inlined_call_operand.hbm [shape: bf16[128,128], index: 5, kind: input, shape index: {}]
  %s6 = inlined_call_operand.hbm [shape: f32[1,128], index: 6, kind: input, shape index: {}]
  %s7 = inlined_call_operand.hbm [shape: bf16[128,128], index: 7, kind: input, shape index: {}]
  %s8 = inlined_call_operand.hbm [shape: f32[1,128], index: 8, kind: input, shape index: {}]
  %s9 = inlined_call_operand.vmem [shape: bf16[8,128], index: 9, kind: output, shape index: {}]
  %s10 = sld [smem:[#allocation0]]
  $region104: #{net_forward.1} parent=0
    _
  %s12 = ssub.s32 1, %s10
  %s13 = scalar_select 0, %s12, %s10
  $region1: #{net_forward.1} parent=0
    #allocation2 [shape = 'u8[8192]{0}', space=vmem, size = 0x2000, scoped, tag = 'input window, operand 0, single buffered']
    #allocation3 [shape = 's32[1]{0}', space=sflag, size = 0x4, scoped, tag = 'scoped memory for net_forward.1']
    #allocation4 [shape = 'u8[32768]{0}', space=vmem, size = 0x8000, scoped, tag = 'input window, operand 3, single buffered']
    #allocation5 [shape = 's32[1]{0}', space=sflag, size = 0x4, scoped, tag = 'scoped memory for net_forward.1']
    #allocation6 [shape = 'u8[512]{0}', space=vmem, size = 0x400, scoped, tag = 'input window, operand 4, single buffered']
    #allocation7 [shape = 'u8[32768]{0}', space=vmem, size = 0x8000, scoped, tag = 'input window, operand 5, single buffered']
    #allocation8 [shape = 's32[1]{0}', space=sflag, size = 0x4, scoped, tag = 'scoped memory for net_forward.1']
    #allocation9 [shape = 'u8[512]{0}', space=vmem, size = 0x400, scoped, tag = 'input window, operand 6, single buffered']
    #allocation10 [shape = 'u8[32768]{0}', space=vmem, size = 0x8000, scoped, tag = 'input window, operand 7, single buffered']
    #allocation11 [shape = 's32[1]{0}', space=sflag, size = 0x4, scoped, tag = 'scoped memory for net_forward.1']
    #allocation12 [shape = 'u8[512]{0}', space=vmem, size = 0x400, scoped, tag = 'input window, operand 8, single buffered']
    #allocation13 [shape = 'u8[4096]{0}', space=vmem, size = 0x1000, scoped, tag = 'output window, operand 0, single buffered']
    %14 = vsyncpa [#allocation3], 0
    %15 = vsyncpa [#allocation5], 0
    %16 = vsyncpa [#allocation8], 0
    %17 = vsyncpa [#allocation11], 0
    // Predicated region
    $region2: #{net_forward.1} parent=1 // pred_check
      _
    $region3: #{net_forward.1} parent=1 // pred_check_branch
      %19 = sbr.rel (0) target = $region5
    $region4: #{net_forward.1} parent=1 // pred_region
      %s21 = ssub.s32 256, 128
      %22 = vsyncadd [#allocation3], %s21
      %s23 = sshll.u32 [#allocation2], 4
      %s24 = int_to_ptr.vmem [resolvable:$true] %s23
      %29 = dma.hbm_to_vmem [thread:$0]  %s0, 128, %s24, [#allocation3], 128, 128, 8
    $region5: #{net_forward.1} parent=1 // pred_fallthru
      _
    // Predicated region
    $region6: #{net_forward.1} parent=1 // pred_check
      _
    $region7: #{net_forward.1} parent=1 // pred_check_branch
      %31 = sbr.rel (0) target = $region9
    $region8: #{net_forward.1} parent=1 // pred_region
      _
    $region9: #{net_forward.1} parent=1 // pred_fallthru
      _
    // Predicated region
    $region10: #{net_forward.1} parent=1 // pred_check
      _
    $region11: #{net_forward.1} parent=1 // pred_check_branch
      %33 = sbr.rel (0) target = $region13
    $region12: #{net_forward.1} parent=1 // pred_region
      _
    $region13: #{net_forward.1} parent=1 // pred_fallthru
      _
    // Predicated region
    $region14: #{net_forward.1} parent=1 // pred_check
      _
    $region15: #{net_forward.1} parent=1 // pred_check_branch
      %35 = sbr.rel (0) target = $region17
    $region16: #{net_forward.1} parent=1 // pred_region
      %s37 = ssub.s32 1024, 1024
      %38 = vsyncadd [#allocation5], %s37
      %s39 = sshll.u32 [#allocation4], 4
      %s40 = int_to_ptr.vmem [resolvable:$true] %s39
      %45 = dma.hbm_to_vmem [thread:$0]  %s3, 1024, %s40, [#allocation5], 64, 64, 4
    $region17: #{net_forward.1} parent=1 // pred_fallthru
      _
    // Predicated region
    $region18: #{net_forward.1} parent=1 // pred_check
      _
    $region19: #{net_forward.1} parent=1 // pred_check_branch
      %47 = sbr.rel (0) target = $region21
    $region20: #{net_forward.1} parent=1 // pred_region
      %s49 = ssub.s32 16, 16
      %50 = vsyncadd [#allocation5], %s49
      %s52 = sshll.u32 [#allocation6], 4
      %s53 = int_to_ptr.vmem [resolvable:$true] %s52
      %55 = dma.hbm_to_vmem [thread:$0]  %s4, 16, %s53, [#allocation5]
    $region21: #{net_forward.1} parent=1 // pred_fallthru
      _
    // Predicated region
    $region22: #{net_forward.1} parent=1 // pred_check
      _
    $region23: #{net_forward.1} parent=1 // pred_check_branch
      %57 = sbr.rel (0) target = $region25
    $region24: #{net_forward.1} parent=1 // pred_region
      %s59 = ssub.s32 1024, 1024
      %60 = vsyncadd [#allocation8], %s59
      %s61 = sshll.u32 [#allocation7], 4
      %s62 = int_to_ptr.vmem [resolvable:$true] %s61
      %67 = dma.hbm_to_vmem [thread:$0]  %s5, 1024, %s62, [#allocation8], 64, 64, 4
    $region25: #{net_forward.1} parent=1 // pred_fallthru
      _
    // Predicated region
    $region26: #{net_forward.1} parent=1 // pred_check
      _
    $region27: #{net_forward.1} parent=1 // pred_check_branch
      %69 = sbr.rel (0) target = $region29
    $region28: #{net_forward.1} parent=1 // pred_region
      %s71 = ssub.s32 16, 16
      %72 = vsyncadd [#allocation8], %s71
      %s74 = sshll.u32 [#allocation9], 4
      %s75 = int_to_ptr.vmem [resolvable:$true] %s74
      %77 = dma.hbm_to_vmem [thread:$0]  %s6, 16, %s75, [#allocation8]
    $region29: #{net_forward.1} parent=1 // pred_fallthru
      _
    // Predicated region
    $region30: #{net_forward.1} parent=1 // pred_check
      _
    $region31: #{net_forward.1} parent=1 // pred_check_branch
      %79 = sbr.rel (0) target = $region33
    $region32: #{net_forward.1} parent=1 // pred_region
      %s81 = ssub.s32 1024, 1024
      %82 = vsyncadd [#allocation11], %s81
      %s83 = sshll.u32 [#allocation10], 4
      %s84 = int_to_ptr.vmem [resolvable:$true] %s83
      %89 = dma.hbm_to_vmem [thread:$0]  %s7, 1024, %s84, [#allocation11], 64, 64, 4
    $region33: #{net_forward.1} parent=1 // pred_fallthru
      _
    // Predicated region
    $region34: #{net_forward.1} parent=1 // pred_check
      _
    $region35: #{net_forward.1} parent=1 // pred_check_branch
      %91 = sbr.rel (0) target = $region37
    $region36: #{net_forward.1} parent=1 // pred_region
      %s93 = ssub.s32 16, 16
      %94 = vsyncadd [#allocation11], %s93
      %s96 = sshll.u32 [#allocation12], 4
      %s97 = int_to_ptr.vmem [resolvable:$true] %s96
      %99 = dma.hbm_to_vmem [thread:$0]  %s8, 16, %s97, [#allocation11]
    $region37: #{net_forward.1} parent=1 // pred_fallthru
      _
    // Predicated region
    $region38: #{net_forward.1} parent=1 // pred_check
      _
    $region39: #{net_forward.1} parent=1 // pred_check_branch
      %101 = sbr.rel (0) target = $region41
    $region40: #{net_forward.1} parent=1 // pred_region
      %102 = dma.done [#allocation3], 256
    $region41: #{net_forward.1} parent=1 // pred_fallthru
      _
    // Predicated region
    $region42: #{net_forward.1} parent=1 // pred_check
      _
    $region43: #{net_forward.1} parent=1 // pred_check_branch
      %104 = sbr.rel (0) target = $region45
    $region44: #{net_forward.1} parent=1 // pred_region
      %105 = dma.done [#allocation5], 1024
    $region45: #{net_forward.1} parent=1 // pred_fallthru
      _
    // Predicated region
    $region46: #{net_forward.1} parent=1 // pred_check
      _
    $region47: #{net_forward.1} parent=1 // pred_check_branch
      %107 = sbr.rel (0) target = $region49
    $region48: #{net_forward.1} parent=1 // pred_region
      %108 = dma.done [#allocation5], 16
    $region49: #{net_forward.1} parent=1 // pred_fallthru
      _
    // Predicated region
    $region50: #{net_forward.1} parent=1 // pred_check
      _
    $region51: #{net_forward.1} parent=1 // pred_check_branch
      %110 = sbr.rel (0) target = $region53
    $region52: #{net_forward.1} parent=1 // pred_region
      %111 = dma.done [#allocation8], 1024
    $region53: #{net_forward.1} parent=1 // pred_fallthru
      _
    // Predicated region
    $region54: #{net_forward.1} parent=1 // pred_check
      _
    $region55: #{net_forward.1} parent=1 // pred_check_branch
      %113 = sbr.rel (0) target = $region57
    $region56: #{net_forward.1} parent=1 // pred_region
      %114 = dma.done [#allocation8], 16
    $region57: #{net_forward.1} parent=1 // pred_fallthru
      _
    // Predicated region
    $region58: #{net_forward.1} parent=1 // pred_check
      _
    $region59: #{net_forward.1} parent=1 // pred_check_branch
      %116 = sbr.rel (0) target = $region61
    $region60: #{net_forward.1} parent=1 // pred_region
      %117 = dma.done [#allocation11], 1024
    $region61: #{net_forward.1} parent=1 // pred_fallthru
      _
    // Predicated region
    $region62: #{net_forward.1} parent=1 // pred_check
      _
    $region63: #{net_forward.1} parent=1 // pred_check_branch
      %119 = sbr.rel (0) target = $region65
    $region64: #{net_forward.1} parent=1 // pred_region
      %120 = dma.done [#allocation11], 16
    $region65: #{net_forward.1} parent=1 // pred_fallthru
      _
    %v122 = vld [vmem:[#allocation2] sm:$0xff]
    %v123 = vld [vmem:[#allocation2 + $0x8] sm:$0xff]
    %v124 = vpack.c.bf16 %v123, %v122
    %v125 = vld [vmem:[%s1] sm:$0xf]
    %v126 = vld [vmem:[%s1 + $0x4] sm:$0xf]
    %v127 = vld [vmem:[%s2] sm:$0x1]
    %v129 = vlaneseq
    %v130 = vshrl.u32 %v129, 7
    %v131 = vsub.s32 0, %v130
    %v132 = vrot.slane %v127, %v131
    %v136 = vunpack.c.l.b16 %v125
    %v137 = vunpack.c.l.b16 %v126
    %v138 = vpack.c.b16 %v137, %v136
    %vm140 = vcmask 130048
    %v142 = vsel %vm140, %v124, 0
    %144 = vmatprep.subr.bf16.mxu0 0
    %145 = vmatpush1.bf16.msra.mxu0 0
    %146 = vmatprep.subr.bf16.mxu0 0
    %147 = vmatpush1.bf16.msra.mxu0 0
    %148 = vmatprep.subr.bf16.mxu0 0
    %149 = vmatpush1.bf16.msra.mxu0 0
    %150 = vmatprep.subr.bf16.mxu0 0
    %151 = vmatpush1.bf16.msra.mxu0 0
    %152 = vmatprep.subr.bf16.mxu0 0
    %153 = vmatpush1.bf16.msra.mxu0 0
    %154 = vmatprep.subr.bf16.mxu0 0
    %155 = vmatpush1.bf16.msra.mxu0 0
    %156 = vmatprep.subr.bf16.mxu0 0
    %157 = vmatpush1.bf16.msra.mxu0 0
    %158 = vmatprep.subr.bf16.mxu0 0
    %159 = vmatpush1.bf16.msra.mxu0 %v138
    %160 = vmatprep.subr.bf16.mxu0 0
    %161 = vmatpush2.bf16.msra.mxu0 0
    %162 = vmatprep.subr.bf16.mxu0 0
    %163 = vmatpush2.bf16.msra.mxu0 0
    %164 = vmatprep.subr.bf16.mxu0 0
    %165 = vmatpush2.bf16.msra.mxu0 0
    %166 = vmatprep.subr.bf16.mxu0 0
    %167 = vmatpush2.bf16.msra.mxu0 0
    %168 = vmatprep.subr.bf16.mxu0 0
    %169 = vmatpush2.bf16.msra.mxu0 0
    %170 = vmatprep.subr.bf16.mxu0 0
    %171 = vmatpush2.bf16.msra.mxu0 0
    %172 = vmatprep.subr.bf16.mxu0 0
    %173 = vmatpush2.bf16.msra.mxu0 0
    %174 = vmatprep.subr.bf16.mxu0 0
    %175 = vmatpush2.bf16.msra.mxu0 0
    %176 = vmatprep.mubr.bf16.mxu0 0
    %177 = vmatmul.mubr.bf16.gmra.mxu0 %v142
    %v178 = vpop.f32.mrf.mxu0
    %v179 = vadd.f32 %v132, %v178
    %v180 = vpop.f32.mrf.mxu0
    %v181 = vpop.f32.mrf.mxu0
    %v182 = vadd.f32 %v132, %v181
    %v183 = vpop.f32.mrf.mxu0
    %184 = vdwg.mxu0
    %v185 = vmax.f32 %v179, 0.0
    %v186 = vmax.f32 %v182, 0.0
    %v187 = vpack.c.bf16 %v186, %v185
    %v188 = vld [vmem:[#allocation4] sm:$0xf]
    %v189 = vld [vmem:[#allocation4 + $0x4] sm:$0xf]
    %v190 = vld [vmem:[#allocation4 + $0x8] sm:$0xf]
    %v191 = vld [vmem:[#allocation4 + $0xc] sm:$0xf]
    %v192 = vld [vmem:[#allocation4 + $0x10] sm:$0xf]
    %v193 = vld [vmem:[#allocation4 + $0x14] sm:$0xf]
    %v194 = vld [vmem:[#allocation4 + $0x18] sm:$0xf]
    %v195 = vld [vmem:[#allocation4 + $0x1c] sm:$0xf]
    %v196 = vld [vmem:[#allocation4 + $0x20] sm:$0xf]
    %v197 = vld [vmem:[#allocation4 + $0x24] sm:$0xf]
    %v198 = vld [vmem:[#allocation4 + $0x28] sm:$0xf]
    %v199 = vld [vmem:[#allocation4 + $0x2c] sm:$0xf]
    %v200 = vld [vmem:[#allocation4 + $0x30] sm:$0xf]
    %v201 = vld [vmem:[#allocation4 + $0x34] sm:$0xf]
    %v202 = vld [vmem:[#allocation4 + $0x38] sm:$0xf]
    %v203 = vld [vmem:[#allocation4 + $0x3c] sm:$0xf]
    %v204 = vld [vmem:[#allocation6] sm:$0x1]
    %v206 = vlaneseq
    %v207 = vshrl.u32 %v206, 7
    %v208 = vsub.s32 0, %v207
    %v209 = vrot.slane %v204, %v208
    %v227 = vunpack.c.l.b16 %v188
    %v228 = vunpack.c.l.b16 %v189
    %v229 = vunpack.c.l.b16 %v190
    %v230 = vunpack.c.l.b16 %v191
    %v231 = vunpack.c.l.b16 %v192
    %v232 = vunpack.c.l.b16 %v193
    %v233 = vunpack.c.l.b16 %v194
    %v234 = vunpack.c.l.b16 %v195
    %v235 = vunpack.c.l.b16 %v196
    %v236 = vunpack.c.l.b16 %v197
    %v237 = vunpack.c.l.b16 %v198
    %v238 = vunpack.c.l.b16 %v199
    %v239 = vunpack.c.l.b16 %v200
    %v240 = vunpack.c.l.b16 %v201
    %v241 = vunpack.c.l.b16 %v202
    %v242 = vunpack.c.l.b16 %v203
    %v243 = vpack.c.b16 %v228, %v227
    %v244 = vpack.c.b16 %v230, %v229
    %v245 = vpack.c.b16 %v232, %v231
    %v246 = vpack.c.b16 %v234, %v233
    %v247 = vpack.c.b16 %v236, %v235
    %v248 = vpack.c.b16 %v238, %v237
    %v249 = vpack.c.b16 %v240, %v239
    %v250 = vpack.c.b16 %v242, %v241
    %259 = vmatprep.subr.bf16.mxu0 0
    %260 = vmatpush1.bf16.msra.mxu0 %v250
    %261 = vmatprep.subr.bf16.mxu0 0
    %262 = vmatpush1.bf16.msra.mxu0 %v249
    %263 = vmatprep.subr.bf16.mxu0 0
    %264 = vmatpush1.bf16.msra.mxu0 %v248
    %265 = vmatprep.subr.bf16.mxu0 0
    %266 = vmatpush1.bf16.msra.mxu0 %v247
    %267 = vmatprep.subr.bf16.mxu0 0
    %268 = vmatpush1.bf16.msra.mxu0 %v246
    %269 = vmatprep.subr.bf16.mxu0 0
    %270 = vmatpush1.bf16.msra.mxu0 %v245
    %271 = vmatprep.subr.bf16.mxu0 0
    %272 = vmatpush1.bf16.msra.mxu0 %v244
    %273 = vmatprep.subr.bf16.mxu0 0
    %274 = vmatpush1.bf16.msra.mxu0 %v243
    %275 = vmatprep.subr.bf16.mxu0 0
    %276 = vmatpush2.bf16.msra.mxu0 0
    %277 = vmatprep.subr.bf16.mxu0 0
    %278 = vmatpush2.bf16.msra.mxu0 0
    %279 = vmatprep.subr.bf16.mxu0 0
    %280 = vmatpush2.bf16.msra.mxu0 0
    %281 = vmatprep.subr.bf16.mxu0 0
    %282 = vmatpush2.bf16.msra.mxu0 0
    %283 = vmatprep.subr.bf16.mxu0 0
    %284 = vmatpush2.bf16.msra.mxu0 0
    %285 = vmatprep.subr.bf16.mxu0 0
    %286 = vmatpush2.bf16.msra.mxu0 0
    %287 = vmatprep.subr.bf16.mxu0 0
    %288 = vmatpush2.bf16.msra.mxu0 0
    %289 = vmatprep.subr.bf16.mxu0 0
    %290 = vmatpush2.bf16.msra.mxu0 0
    %291 = vmatprep.mubr.bf16.mxu0 0
    %292 = vmatmul.mubr.bf16.gmra.mxu0 %v187
    %v293 = vpop.f32.mrf.mxu0
    %v294 = vadd.f32 %v209, %v293
    %v295 = vpop.f32.mrf.mxu0
    %v296 = vpop.f32.mrf.mxu0
    %v297 = vadd.f32 %v209, %v296
    %v298 = vpop.f32.mrf.mxu0
    %299 = vdwg.mxu0
    %v300 = vmax.f32 %v294, 0.0
    %v301 = vmax.f32 %v297, 0.0
    %v302 = vpack.c.bf16 %v301, %v300
    %v303 = vld [vmem:[#allocation7] sm:$0xf]
    %v304 = vld [vmem:[#allocation7 + $0x4] sm:$0xf]
    %v305 = vld [vmem:[#allocation7 + $0x8] sm:$0xf]
    %v306 = vld [vmem:[#allocation7 + $0xc] sm:$0xf]
    %v307 = vld [vmem:[#allocation7 + $0x10] sm:$0xf]
    %v308 = vld [vmem:[#allocation7 + $0x14] sm:$0xf]
    %v309 = vld [vmem:[#allocation7 + $0x18] sm:$0xf]
    %v310 = vld [vmem:[#allocation7 + $0x1c] sm:$0xf]
    %v311 = vld [vmem:[#allocation7 + $0x20] sm:$0xf]
    %v312 = vld [vmem:[#allocation7 + $0x24] sm:$0xf]
    %v313 = vld [vmem:[#allocation7 + $0x28] sm:$0xf]
    %v314 = vld [vmem:[#allocation7 + $0x2c] sm:$0xf]
    %v315 = vld [vmem:[#allocation7 + $0x30] sm:$0xf]
    %v316 = vld [vmem:[#allocation7 + $0x34] sm:$0xf]
    %v317 = vld [vmem:[#allocation7 + $0x38] sm:$0xf]
    %v318 = vld [vmem:[#allocation7 + $0x3c] sm:$0xf]
    %v319 = vld [vmem:[#allocation9] sm:$0x1]
    %v321 = vlaneseq
    %v322 = vshrl.u32 %v321, 7
    %v323 = vsub.s32 0, %v322
    %v324 = vrot.slane %v319, %v323
    %v342 = vunpack.c.l.b16 %v303
    %v343 = vunpack.c.l.b16 %v304
    %v344 = vunpack.c.l.b16 %v305
    %v345 = vunpack.c.l.b16 %v306
    %v346 = vunpack.c.l.b16 %v307
    %v347 = vunpack.c.l.b16 %v308
    %v348 = vunpack.c.l.b16 %v309
    %v349 = vunpack.c.l.b16 %v310
    %v350 = vunpack.c.l.b16 %v311
    %v351 = vunpack.c.l.b16 %v312
    %v352 = vunpack.c.l.b16 %v313
    %v353 = vunpack.c.l.b16 %v314
    %v354 = vunpack.c.l.b16 %v315
    %v355 = vunpack.c.l.b16 %v316
    %v356 = vunpack.c.l.b16 %v317
    %v357 = vunpack.c.l.b16 %v318
    %v358 = vpack.c.b16 %v343, %v342
    %v359 = vpack.c.b16 %v345, %v344
    %v360 = vpack.c.b16 %v347, %v346
    %v361 = vpack.c.b16 %v349, %v348
    %v362 = vpack.c.b16 %v351, %v350
    %v363 = vpack.c.b16 %v353, %v352
    %v364 = vpack.c.b16 %v355, %v354
    %v365 = vpack.c.b16 %v357, %v356
    %374 = vmatprep.subr.bf16.mxu0 0
    %375 = vmatpush1.bf16.msra.mxu0 %v365
    %376 = vmatprep.subr.bf16.mxu0 0
    %377 = vmatpush1.bf16.msra.mxu0 %v364
    %378 = vmatprep.subr.bf16.mxu0 0
    %379 = vmatpush1.bf16.msra.mxu0 %v363
    %380 = vmatprep.subr.bf16.mxu0 0
    %381 = vmatpush1.bf16.msra.mxu0 %v362
    %382 = vmatprep.subr.bf16.mxu0 0
    %383 = vmatpush1.bf16.msra.mxu0 %v361
    %384 = vmatprep.subr.bf16.mxu0 0
    %385 = vmatpush1.bf16.msra.mxu0 %v360
    %386 = vmatprep.subr.bf16.mxu0 0
    %387 = vmatpush1.bf16.msra.mxu0 %v359
    %388 = vmatprep.subr.bf16.mxu0 0
    %389 = vmatpush1.bf16.msra.mxu0 %v358
    %390 = vmatprep.subr.bf16.mxu0 0
    %391 = vmatpush2.bf16.msra.mxu0 0
    %392 = vmatprep.subr.bf16.mxu0 0
    %393 = vmatpush2.bf16.msra.mxu0 0
    %394 = vmatprep.subr.bf16.mxu0 0
    %395 = vmatpush2.bf16.msra.mxu0 0
    %396 = vmatprep.subr.bf16.mxu0 0
    %397 = vmatpush2.bf16.msra.mxu0 0
    %398 = vmatprep.subr.bf16.mxu0 0
    %399 = vmatpush2.bf16.msra.mxu0 0
    %400 = vmatprep.subr.bf16.mxu0 0
    %401 = vmatpush2.bf16.msra.mxu0 0
    %402 = vmatprep.subr.bf16.mxu0 0
    %403 = vmatpush2.bf16.msra.mxu0 0
    %404 = vmatprep.subr.bf16.mxu0 0
    %405 = vmatpush2.bf16.msra.mxu0 0
    %406 = vmatprep.mubr.bf16.mxu0 0
    %407 = vmatmul.mubr.bf16.gmra.mxu0 %v302
    %v408 = vpop.f32.mrf.mxu0
    %v409 = vadd.f32 %v324, %v408
    %v410 = vpop.f32.mrf.mxu0
    %v411 = vpop.f32.mrf.mxu0
    %v412 = vadd.f32 %v324, %v411
    %v413 = vpop.f32.mrf.mxu0
    %414 = vdwg.mxu0
    %v415 = vmax.f32 %v409, 0.0
    %v416 = vmax.f32 %v412, 0.0
    %v417 = vpack.c.bf16 %v416, %v415
    %v418 = vld [vmem:[#allocation10] sm:$0xf]
    %v419 = vld [vmem:[#allocation10 + $0x4] sm:$0xf]
    %v420 = vld [vmem:[#allocation10 + $0x8] sm:$0xf]
    %v421 = vld [vmem:[#allocation10 + $0xc] sm:$0xf]
    %v422 = vld [vmem:[#allocation10 + $0x10] sm:$0xf]
    %v423 = vld [vmem:[#allocation10 + $0x14] sm:$0xf]
    %v424 = vld [vmem:[#allocation10 + $0x18] sm:$0xf]
    %v425 = vld [vmem:[#allocation10 + $0x1c] sm:$0xf]
    %v426 = vld [vmem:[#allocation10 + $0x20] sm:$0xf]
    %v427 = vld [vmem:[#allocation10 + $0x24] sm:$0xf]
    %v428 = vld [vmem:[#allocation10 + $0x28] sm:$0xf]
    %v429 = vld [vmem:[#allocation10 + $0x2c] sm:$0xf]
    %v430 = vld [vmem:[#allocation10 + $0x30] sm:$0xf]
    %v431 = vld [vmem:[#allocation10 + $0x34] sm:$0xf]
    %v432 = vld [vmem:[#allocation10 + $0x38] sm:$0xf]
    %v433 = vld [vmem:[#allocation10 + $0x3c] sm:$0xf]
    %v434 = vld [vmem:[#allocation12] sm:$0x1]
    %v436 = vlaneseq
    %v437 = vshrl.u32 %v436, 7
    %v438 = vsub.s32 0, %v437
    %v439 = vrot.slane %v434, %v438
    %v457 = vunpack.c.l.b16 %v418
    %v458 = vunpack.c.l.b16 %v419
    %v459 = vunpack.c.l.b16 %v420
    %v460 = vunpack.c.l.b16 %v421
    %v461 = vunpack.c.l.b16 %v422
    %v462 = vunpack.c.l.b16 %v423
    %v463 = vunpack.c.l.b16 %v424
    %v464 = vunpack.c.l.b16 %v425
    %v465 = vunpack.c.l.b16 %v426
    %v466 = vunpack.c.l.b16 %v427
    %v467 = vunpack.c.l.b16 %v428
    %v468 = vunpack.c.l.b16 %v429
    %v469 = vunpack.c.l.b16 %v430
    %v470 = vunpack.c.l.b16 %v431
    %v471 = vunpack.c.l.b16 %v432
    %v472 = vunpack.c.l.b16 %v433
    %v473 = vpack.c.b16 %v458, %v457
    %v474 = vpack.c.b16 %v460, %v459
    %v475 = vpack.c.b16 %v462, %v461
    %v476 = vpack.c.b16 %v464, %v463
    %v477 = vpack.c.b16 %v466, %v465
    %v478 = vpack.c.b16 %v468, %v467
    %v479 = vpack.c.b16 %v470, %v469
    %v480 = vpack.c.b16 %v472, %v471
    %489 = vmatprep.subr.bf16.mxu0 0
    %490 = vmatpush1.bf16.msra.mxu0 %v480
    %491 = vmatprep.subr.bf16.mxu0 0
    %492 = vmatpush1.bf16.msra.mxu0 %v479
    %493 = vmatprep.subr.bf16.mxu0 0
    %494 = vmatpush1.bf16.msra.mxu0 %v478
    %495 = vmatprep.subr.bf16.mxu0 0
    %496 = vmatpush1.bf16.msra.mxu0 %v477
    %497 = vmatprep.subr.bf16.mxu0 0
    %498 = vmatpush1.bf16.msra.mxu0 %v476
    %499 = vmatprep.subr.bf16.mxu0 0
    %500 = vmatpush1.bf16.msra.mxu0 %v475
    %501 = vmatprep.subr.bf16.mxu0 0
    %502 = vmatpush1.bf16.msra.mxu0 %v474
    %503 = vmatprep.subr.bf16.mxu0 0
    %504 = vmatpush1.bf16.msra.mxu0 %v473
    %505 = vmatprep.subr.bf16.mxu0 0
    %506 = vmatpush2.bf16.msra.mxu0 0
    %507 = vmatprep.subr.bf16.mxu0 0
    %508 = vmatpush2.bf16.msra.mxu0 0
    %509 = vmatprep.subr.bf16.mxu0 0
    %510 = vmatpush2.bf16.msra.mxu0 0
    %511 = vmatprep.subr.bf16.mxu0 0
    %512 = vmatpush2.bf16.msra.mxu0 0
    %513 = vmatprep.subr.bf16.mxu0 0
    %514 = vmatpush2.bf16.msra.mxu0 0
    %515 = vmatprep.subr.bf16.mxu0 0
    %516 = vmatpush2.bf16.msra.mxu0 0
    %517 = vmatprep.subr.bf16.mxu0 0
    %518 = vmatpush2.bf16.msra.mxu0 0
    %519 = vmatprep.subr.bf16.mxu0 0
    %520 = vmatpush2.bf16.msra.mxu0 0
    %521 = vmatprep.mubr.bf16.mxu0 0
    %522 = vmatmul.mubr.bf16.gmra.mxu0 %v417
    %v523 = vpop.f32.mrf.mxu0
    %v524 = vadd.f32 %v439, %v523
    %v525 = vpop.f32.mrf.mxu0
    %v526 = vpop.f32.mrf.mxu0
    %v527 = vadd.f32 %v439, %v526
    %v528 = vpop.f32.mrf.mxu0
    %529 = vdwg.mxu0
    %v530 = vpack.c.bf16 %v527, %v524
    %v532 = vunpack.c.l.b16 %v530
    %v533 = vunpack.c.h.b16 %v530
    %v534 = vpack.c.b16 %v532, %v532
    %v535 = vpack.c.b16 %v533, %v533
    %538 = vst [vmem:[#allocation13] sm:$0xf] %v534
    %539 = vst [vmem:[#allocation13 + $0x4] sm:$0xf] %v535
    // Predicated region
    $region66: #{net_forward.1} parent=1 // pred_check
      _
    $region67: #{net_forward.1} parent=1 // pred_check_branch
      %541 = sbr.rel (0) target = $region69
    $region68: #{net_forward.1} parent=1 // pred_region
      // Predicated region
      $region70: #{net_forward.1} parent=68 // pred_check
        _
      $region71: #{net_forward.1} parent=68 // pred_check_branch
        %543 = sbr.rel (0) target = $region73
      $region72: #{net_forward.1} parent=68 // pred_region
        // Predicated region
        $region74: #{net_forward.1} parent=72 // pred_check
          _
        $region75: #{net_forward.1} parent=72 // pred_check_branch
          %545 = sbr.rel target = $region77
        $region76: #{net_forward.1} parent=72 // pred_region
          // Predicated region
          $region89: #{net_forward.1} parent=76 // pred_check
            _
          $region90: #{net_forward.1} parent=76 // pred_check_branch
            %561 = sbr.rel (0) target = $region92
          $region91: #{net_forward.1} parent=76 // pred_region
            %s563 = ssub.s32 16, 1
            loop: start=0, step=1, limit=1
            $region93: #{net_forward.1} parent=91 // loop_pre_header
              _
            $region94: #{net_forward.1} parent=91 // loop_header
              %s565 = sphi 0, %s569
              %p566 = scmp.ge.s32.totalorder %s565, 1
              %s570 = sphi [#allocation13], [#allocation13]
              %s571 = sphi %s9, %s9
            $region95: #{net_forward.1} parent=91 // loop_header_branch
              %568 = sbr.rel (%p566) target = $region99
            $region96: #{net_forward.1} parent=91 // loop_body
              %v572 = vld [vmem:[%s570] sm:%s563]
              %573 = vst [vmem:[%s571] sm:%s563] %v572
            $region97: #{net_forward.1} parent=91 // loop_footer
              %s569 = sadd.s32 1, %s565
            $region98: #{net_forward.1} parent=91 // loop_footer_branch
              %564 = sbr.rel target = $region94
            $region99: #{net_forward.1} parent=91 // loop_exit
              _
          $region92: #{net_forward.1} parent=76 // pred_fallthru
            _
        $region77: #{net_forward.1} parent=72 // pred_fallthru
          _
        // Predicated region
        $region78: #{net_forward.1} parent=72 // pred_check
          _
        $region79: #{net_forward.1} parent=72 // pred_check_branch
          %547 = sbr.rel (0) target = $region81
        $region80: #{net_forward.1} parent=72 // pred_region
          %s549 = ssub.s32 16, 1
          loop: start=0, step=1, limit=1
          $region82: #{net_forward.1} parent=80 // loop_pre_header
            _
          $region83: #{net_forward.1} parent=80 // loop_header
            %s551 = sphi 0, %s555
            %p552 = scmp.ge.s32.totalorder %s551, 1
            %s556 = sphi [#allocation13], [#allocation13]
            %s557 = sphi %s9, %s9
          $region84: #{net_forward.1} parent=80 // loop_header_branch
            %554 = sbr.rel (%p552) target = $region88
          $region85: #{net_forward.1} parent=80 // loop_body
            %v558 = vld [vmem:[%s556] sm:%s549]
            %559 = vst [vmem:[%s557] sm:%s549] %v558
          $region86: #{net_forward.1} parent=80 // loop_footer
            %s555 = sadd.s32 1, %s551
          $region87: #{net_forward.1} parent=80 // loop_footer_branch
            %550 = sbr.rel target = $region83
          $region88: #{net_forward.1} parent=80 // loop_exit
            _
        $region81: #{net_forward.1} parent=72 // pred_fallthru
          _
      $region73: #{net_forward.1} parent=68 // pred_fallthru
        _
      %574 = vnop
    $region69: #{net_forward.1} parent=1 // pred_fallthru
      _
    // Predicated region
    $region100: #{net_forward.1} parent=1 // pred_check
      _
    $region101: #{net_forward.1} parent=1 // pred_check_branch
      %576 = sbr.rel (0) target = $region103
    $region102: #{net_forward.1} parent=1 // pred_region
      _
    $region103: #{net_forward.1} parent=1 // pred_fallthru
      _
    %577 = vsyncpa [#allocation3], 1
    %578 = vsyncpa [#allocation5], 1
    %579 = vsyncpa [#allocation8], 1
    %580 = vsyncpa [#allocation11], 1

</llo_original>
